<compile_context>
chip_gen: v6e
topology: v6e:2x2x1
jax: 0.10.0
libtpu: 0.0.40
codegen_flags: <defaults>
</compile_context>

<pallas_src>
import functools

import jax
import jax.numpy as jnp
from jax.experimental import pallas as pl
from jax.experimental.pallas import tpu as pltpu


def _round_up(x, m):
    return ((x + m - 1) // m) * m


def _vmem_limit_bytes(n_lanes, input_dim, output_dim):
    """VMEM cap sized from the padded footprint (review: derive from B)."""
    lanes = _round_up(max(int(n_lanes), 1), 128)
    # (rows, lanes) tensors that scale with the batch: x, h1, h2, va, q.
    rows = sum(_round_up(r, 8) for r in
               (input_dim, 32, 64, output_dim + 1, output_dim))
    act = 2 * rows * lanes * 4           # x2: double-buffering / compiler slack
    weights = 1 << 19                    # all padded weights + biases < 0.5 MiB
    return int(min(120 << 20, max(4 << 20, act + weights + (2 << 20))))


# --------------------------------------------------------------------------
# Shared forward body (transposed: features on sublanes, batch on lanes).
# Weights are bf16 (out, in); biases are f32 (out, 1); accumulation is f32.
# --------------------------------------------------------------------------
def _forward_va(x_ref, w1_ref, b1_ref, w2_ref, b2_ref, wva_ref, bva_ref):
    x = x_ref[...]                                             # (in, Bt) bf16
    h1 = jnp.dot(w1_ref[...], x,
                 preferred_element_type=jnp.float32) + b1_ref[...]
    h1 = jnp.maximum(h1, 0.0)                                  # (32, Bt) f32
    h2 = jnp.dot(w2_ref[...], h1.astype(jnp.bfloat16),
                 preferred_element_type=jnp.float32) + b2_ref[...]
    h2 = jnp.maximum(h2, 0.0)                                  # (64, Bt) f32
    va = jnp.dot(wva_ref[...], h2.astype(jnp.bfloat16),
                 preferred_element_type=jnp.float32) + bva_ref[...]
    return va          # (out + 1, Bt) f32 ; advantage rows first, value LAST


# --------------------------------------------------------------------------
# Grid-less full-block kernel (small / VMEM-resident batches).
# --------------------------------------------------------------------------
def _dueling_fused_kernel(x_ref, w1_ref, b1_ref, w2_ref, b2_ref, wva_ref,
                          bva_ref, q_ref, *, dueling_type, output_dim):
    va = _forward_va(x_ref, w1_ref, b1_ref, w2_ref, b2_ref, wva_ref, bva_ref)
    a = va[:output_dim, :]                       # (out, B), starts at row 0
    v = va[output_dim:output_dim + 1, :]         # (1, B)
    red = jnp.max(a) if dueling_type == 'max' else jnp.mean(a)
    q_ref[...] = (v + a - red).astype(q_ref.dtype)


# --------------------------------------------------------------------------
# Two-pass batch-tiled path (parallel grid; both TensorCores on v7x).
# --------------------------------------------------------------------------
def _dueling_stage1_kernel(x_ref, w1_ref, b1_ref, w2_ref, b2_ref, wva_ref,
                           bva_ref, va_ref, part_ref, *, dueling_type,
                           output_dim):
    va = _forward_va(x_ref, w1_ref, b1_ref, w2_ref, b2_ref, wva_ref, bva_ref)
    va_ref[...] = va.astype(va_ref.dtype)
    a = va[:output_dim, :]
    p = jnp.max(a) if dueling_type == 'max' else jnp.sum(a)
    # Broadcast the per-tile partial into a lane-dense (8, 128) block.
    part_ref[...] = jnp.full(part_ref.shape, p, dtype=part_ref.dtype)


def _dueling_finalize_kernel(red_ref, va_ref, q_ref, *, output_dim):
    red = red_ref[0, 0]                          # global reduction (SMEM scalar)
    a = va_ref[:output_dim, :]
    v = va_ref[output_dim:output_dim + 1, :]
    q_ref[...] = (v + a - red).astype(q_ref.dtype)


def _forward_fullblock(xT, w_args, dueling_type, output_dim):
    input_dim, B = xT.shape
    kernel = functools.partial(_dueling_fused_kernel,
                               dueling_type=dueling_type,
                               output_dim=output_dim)

    def full(arr):
        nd = arr.ndim
        return pl.BlockSpec(arr.shape, lambda *_: (0,) * nd,
                            memory_space=pltpu.MemorySpace.VMEM)

    args = (xT,) + tuple(w_args)
    return pl.pallas_call(
        kernel,
        out_shape=jax.ShapeDtypeStruct((output_dim, B), jnp.float32),
        in_specs=[full(a) for a in args],
        out_specs=pl.BlockSpec((output_dim, B), lambda *_: (0, 0),
                               memory_space=pltpu.MemorySpace.VMEM),
        compiler_params=pltpu.CompilerParams(
            vmem_limit_bytes=_vmem_limit_bytes(B, input_dim, output_dim)),
    )(*args)


def _forward_tiled(xT, w_args, dueling_type, output_dim, bt):
    input_dim, B = xT.shape
    nb = B // bt
    vmem_cap = _vmem_limit_bytes(bt, input_dim, output_dim)

    def resident(arr):
        # Constant block index -> weights/biases stay VMEM-resident across the
        # grid; only x / va / q are pipelined.
        nd = arr.ndim
        return pl.BlockSpec(arr.shape, lambda i: (0,) * nd,
                            memory_space=pltpu.MemorySpace.VMEM)

    stage1 = functools.partial(_dueling_stage1_kernel,
                               dueling_type=dueling_type,
                               output_dim=output_dim)
    va, partials = pl.pallas_call(
        stage1,
        grid=(nb,),
        out_shape=(jax.ShapeDtypeStruct((output_dim + 1, B), jnp.float32),
                   jax.ShapeDtypeStruct((8, nb * 128), jnp.float32)),
        in_specs=[pl.BlockSpec((input_dim, bt), lambda i: (0, i))]
                 + [resident(a) for a in w_args],
        out_specs=(pl.BlockSpec((output_dim + 1, bt), lambda i: (0, i)),
                   pl.BlockSpec((8, 128), lambda i: (0, i))),
        compiler_params=pltpu.CompilerParams(
            dimension_semantics=("parallel",),
            vmem_limit_bytes=vmem_cap),
    )(xT, *w_args)

    # Tiny host-side combine of the per-tile partials into the global `red`.
    per_tile = partials[0, ::128]                            # (nb,)
    if dueling_type == 'max':
        red = jnp.max(per_tile)
    else:
        red = jnp.sum(per_tile) / (B * output_dim)
    red = red.reshape(1, 1).astype(jnp.float32)

    finalize = functools.partial(_dueling_finalize_kernel,
                                 output_dim=output_dim)
    qT = pl.pallas_call(
        finalize,
        grid=(nb,),
        out_shape=jax.ShapeDtypeStruct((output_dim, B), jnp.float32),
        in_specs=[pl.BlockSpec(memory_space=pltpu.MemorySpace.SMEM),
                  pl.BlockSpec((output_dim + 1, bt), lambda i: (0, i))],
        out_specs=pl.BlockSpec((output_dim, bt), lambda i: (0, i)),
        compiler_params=pltpu.CompilerParams(
            dimension_semantics=("parallel",),
            vmem_limit_bytes=vmem_cap),
    )(red, va)
    return qT


def dueling_net_forward(x, fused_params, dueling_type='mean', batch_tile=None):
    """x: (B, input_dim) f32. fused_params: see fuse_head_params().

    Returns q of shape (B, output_dim), matching the PyTorch module.
    Pass batch_tile (multiple of 128 dividing B) to use the batch-parallel
    two-pass path for large batches.  On v7x (64 MiB VMEM) prefer the tiled
    path from a smaller B than on v5e/v6e (128 MiB).
    """
    B, input_dim = x.shape
    output_dim = fused_params['wva'].shape[0] - 1

    # Batch on lanes; bf16 MXU operand (halves the x DMA bytes).
    xT = x.T.astype(jnp.bfloat16)

    w_args = (fused_params['w1'], fused_params['b1'],
              fused_params['w2'], fused_params['b2'],
              fused_params['wva'], fused_params['bva'])

    if batch_tile is None or B % batch_tile != 0 or batch_tile % 128 != 0:
        # TODO(synk): mask padded lanes in stage 1 so the tiled two-pass path
        # can also take ragged B (the global mean/max must skip pad columns).
        qT = _forward_fullblock(xT, w_args, dueling_type, output_dim)
    else:
        qT = _forward_tiled(xT, w_args, dueling_type, output_dim, batch_tile)

    return qT.T                                  # back to (B, output_dim)


# --------------------------------------------------------------------------
# Parameter construction (host side).
# --------------------------------------------------------------------------
def init_params(key, input_dim, output_dim):
    """Deterministic synthetic params. (in, out) weights, (1, out) biases."""
    ks = jax.random.split(key, 8)
    scale = 0.1

    def w(k, shape):
        return scale * jax.random.normal(k, shape, dtype=jnp.float32)

    return {
        'w1': w(ks[0], (input_dim, 32)),
        'b1': w(ks[1], (1, 32)),
        'w2': w(ks[2], (32, 64)),
        'b2': w(ks[3], (1, 64)),
        'wv': w(ks[4], (64, 1)),
        'bv': w(ks[5], (1, 1)),
        'wa': w(ks[6], (64, output_dim)),
        'ba': w(ks[7], (1, output_dim)),
    }


def fuse_head_params(params):
    """One-time host-side prep: transpose to (out, in), cast weights to bf16,
    biases to (out, 1) f32 columns, and fuse the head with the VALUE row LAST
    (rows = [advantage...; value]) so the kernel's `a` slice starts at row 0."""
    def wT_bf16(w):
        return jnp.asarray(w).T.astype(jnp.bfloat16)

    def b_col(b):
        return jnp.asarray(b).reshape(-1, 1).astype(jnp.float32)

    wva = jnp.concatenate([params['wa'], params['wv']], axis=1)   # (64, out+1)
    bva = jnp.concatenate([params['ba'], params['bv']], axis=1)   # (1, out+1)
    return {
        'w1': wT_bf16(params['w1']),   # (32, in)   bf16
        'b1': b_col(params['b1']),     # (32, 1)    f32
        'w2': wT_bf16(params['w2']),   # (64, 32)   bf16
        'b2': b_col(params['b2']),     # (64, 1)    f32
        'wva': wT_bf16(wva),           # (out+1,64) bf16, value row last
        'bva': b_col(bva),             # (out+1,1)  f32
    }


def _reference_forward(x, params, dueling_type='mean'):
    """Pure-JAX f32 reference replicating the PyTorch forward exactly."""
    h1 = jnp.maximum(x @ params['w1'] + params['b1'], 0.0)
    h2 = jnp.maximum(h1 @ params['w2'] + params['b2'], 0.0)
    v = h2 @ params['wv'] + params['bv']
    a = h2 @ params['wa'] + params['ba']
    red = jnp.max(a) if dueling_type == 'max' else jnp.mean(a)
    return v + a - red


if __name__ == "__main__":
    key = jax.random.PRNGKey(0)
    k_x, k_p, k_xl, k_xt = jax.random.split(key, 4)

    batch, input_dim, output_dim = 4, 16, 8
    x = jax.random.normal(k_x, (batch, input_dim), dtype=jnp.float32)
    params = init_params(k_p, input_dim, output_dim)
    fused = fuse_head_params(params)

    # bf16 MXU operands (f32 accumulation) -> loosen the old 1e-5 tolerance.
    tol = dict(atol=2e-2, rtol=2e-2)

    # Small-batch path (overhead-dominated; correctness only).
    q = jax.block_until_ready(dueling_net_forward(x, fused, 'mean'))
    assert q.shape == (batch, output_dim)
    assert jnp.allclose(q, _reference_forward(x, params, 'mean'), **tol), \
        "mismatch vs reference (mean)"

    q_max = jax.block_until_ready(dueling_net_forward(x, fused, 'max'))
    assert jnp.allclose(q_max, _reference_forward(x, params, 'max'), **tol), \
        "mismatch vs reference (max)"

    # Amortized grid-less path: batch on lanes, lane-dense output stores.
    xl = jax.random.normal(k_xl, (256, input_dim), dtype=jnp.float32)
    ql = jax.block_until_ready(dueling_net_forward(xl, fused, 'mean'))
    assert jnp.allclose(ql, _reference_forward(xl, params, 'mean'), **tol), \
        "mismatch vs reference (B=256)"

    # Batch-tiled two-pass path (parallel grid, resident weights).
    xt = jax.random.normal(k_xt, (1024, input_dim), dtype=jnp.float32)
    qt = jax.block_until_ready(
        dueling_net_forward(xt, fused, 'mean', batch_tile=256))
    assert jnp.allclose(qt, _reference_forward(xt, params, 'mean'), **tol), \
        "mismatch vs reference (tiled mean)"
    qtm = jax.block_until_ready(
        dueling_net_forward(xt, fused, 'max', batch_tile=256))
    assert jnp.allclose(qtm, _reference_forward(xt, params, 'max'), **tol), \
        "mismatch vs reference (tiled max)"

    print("KERNEL_OK")
</pallas_src>

<mosaic_0001>
module attributes {stable_mosaic.version = 11 : i64} {
  func.func @_dueling_fused_kernel(%arg0: memref<16x4xbf16, #tpu.memory_space<vmem>>, %arg1: memref<32x16xbf16, #tpu.memory_space<vmem>>, %arg2: memref<32x1xf32, #tpu.memory_space<vmem>>, %arg3: memref<64x32xbf16, #tpu.memory_space<vmem>>, %arg4: memref<64x1xf32, #tpu.memory_space<vmem>>, %arg5: memref<9x64xbf16, #tpu.memory_space<vmem>>, %arg6: memref<9x1xf32, #tpu.memory_space<vmem>>, %arg7: memref<8x4xf32, #tpu.memory_space<vmem>>) attributes {dimension_semantics = [], scalar_prefetch = 0 : i64, scratch_operands = 0 : i64, tpu.core_type = #tpu.core_type<tc>} {
    %c0 = arith.constant 0 : index
    %c0_0 = arith.constant 0 : index
    %0 = vector.load %arg0[%c0, %c0_0] : memref<16x4xbf16, #tpu.memory_space<vmem>>, vector<16x4xbf16>
    %c0_1 = arith.constant 0 : index
    %c0_2 = arith.constant 0 : index
    %1 = vector.load %arg1[%c0_1, %c0_2] : memref<32x16xbf16, #tpu.memory_space<vmem>>, vector<32x16xbf16>
    %cst = arith.constant dense<0.000000e+00> : vector<32x4xf32>
    %2 = tpu.matmul %1, %0, %cst {dimension_numbers = #tpu.dot_dimension_numbers<[1], [0], [0], [1], [0, 0, 1, 1], [], []>} : vector<32x16xbf16>, vector<16x4xbf16>, vector<32x4xf32> -> vector<32x4xf32>
    %c0_3 = arith.constant 0 : index
    %c0_4 = arith.constant 0 : index
    %3 = vector.load %arg2[%c0_3, %c0_4] : memref<32x1xf32, #tpu.memory_space<vmem>>, vector<32x1xf32>
    %4 = vector.broadcast %3 : vector<32x1xf32> to vector<32x4xf32>
    %5 = arith.addf %2, %4 : vector<32x4xf32>
    %cst_5 = arith.constant 0.000000e+00 : f32
    %6 = vector.broadcast %cst_5 : f32 to vector<32x4xf32>
    %7 = arith.maximumf %5, %6 : vector<32x4xf32>
    %c0_6 = arith.constant 0 : index
    %c0_7 = arith.constant 0 : index
    %8 = vector.load %arg3[%c0_6, %c0_7] : memref<64x32xbf16, #tpu.memory_space<vmem>>, vector<64x32xbf16>
    %9 = arith.truncf %7 : vector<32x4xf32> to vector<32x4xbf16>
    %cst_8 = arith.constant dense<0.000000e+00> : vector<64x4xf32>
    %10 = tpu.matmul %8, %9, %cst_8 {dimension_numbers = #tpu.dot_dimension_numbers<[1], [0], [0], [1], [0, 0, 1, 1], [], []>} : vector<64x32xbf16>, vector<32x4xbf16>, vector<64x4xf32> -> vector<64x4xf32>
    %c0_9 = arith.constant 0 : index
    %c0_10 = arith.constant 0 : index
    %11 = vector.load %arg4[%c0_9, %c0_10] : memref<64x1xf32, #tpu.memory_space<vmem>>, vector<64x1xf32>
    %12 = vector.broadcast %11 : vector<64x1xf32> to vector<64x4xf32>
    %13 = arith.addf %10, %12 : vector<64x4xf32>
    %cst_11 = arith.constant 0.000000e+00 : f32
    %14 = vector.broadcast %cst_11 : f32 to vector<64x4xf32>
    %15 = arith.maximumf %13, %14 : vector<64x4xf32>
    %c0_12 = arith.constant 0 : index
    %c0_13 = arith.constant 0 : index
    %16 = vector.load %arg5[%c0_12, %c0_13] : memref<9x64xbf16, #tpu.memory_space<vmem>>, vector<9x64xbf16>
    %17 = arith.truncf %15 : vector<64x4xf32> to vector<64x4xbf16>
    %cst_14 = arith.constant dense<0.000000e+00> : vector<9x4xf32>
    %18 = tpu.matmul %16, %17, %cst_14 {dimension_numbers = #tpu.dot_dimension_numbers<[1], [0], [0], [1], [0, 0, 1, 1], [], []>} : vector<9x64xbf16>, vector<64x4xbf16>, vector<9x4xf32> -> vector<9x4xf32>
    %c0_15 = arith.constant 0 : index
    %c0_16 = arith.constant 0 : index
    %19 = vector.load %arg6[%c0_15, %c0_16] : memref<9x1xf32, #tpu.memory_space<vmem>>, vector<9x1xf32>
    %20 = vector.broadcast %19 : vector<9x1xf32> to vector<9x4xf32>
    %21 = arith.addf %18, %20 : vector<9x4xf32>
    %22 = vector.extract_strided_slice %21 {offsets = [0, 0], sizes = [8, 4], strides = [1, 1]} : vector<9x4xf32> to vector<8x4xf32>
    %23 = vector.extract_strided_slice %21 {offsets = [8, 0], sizes = [1, 4], strides = [1, 1]} : vector<9x4xf32> to vector<1x4xf32>
    %24 = vector.shape_cast %22 : vector<8x4xf32> to vector<1x8x4xf32>
    %cst_17 = arith.constant dense<0.000000e+00> : vector<1xf32>
    %25 = vector.multi_reduction <add>, %24, %cst_17 [1, 2] : vector<1x8x4xf32> to vector<1xf32>
    %26 = vector.shape_cast %25 : vector<1xf32> to vector<1x1x1xf32>
    %27 = vector.extract %26[0, 0, 0] : f32 from vector<1x1x1xf32>
    %cst_18 = arith.constant 3.200000e+01 : f32
    %28 = arith.divf %27, %cst_18 : f32
    %29 = vector.broadcast %23 : vector<1x4xf32> to vector<8x4xf32>
    %30 = arith.addf %29, %22 : vector<8x4xf32>
    %31 = vector.broadcast %28 : f32 to vector<8x4xf32>
    %32 = arith.subf %30, %31 : vector<8x4xf32>
    %c0_19 = arith.constant 0 : index
    %c0_20 = arith.constant 0 : index
    %33 = vector.load %arg7[%c0_19, %c0_20] : memref<8x4xf32, #tpu.memory_space<vmem>>, vector<8x4xf32>
    tpu.vector_store %arg7[%c0_19, %c0_20], %32 {strides = array<i32>} : memref<8x4xf32, #tpu.memory_space<vmem>>, vector<8x4xf32>,
    return
  }
}

</mosaic_0001>

<llo_original>
// kernel: tpu_custom_call.1
$region0: #{tpu_custom_call.1}
  #allocation0 [shape = 'u32[]', space=smem, size = 0x4, offset = 0x4, fixed_abs, tag = 'smem constant byte address 0x4 - core index']
  #allocation1 [shape = 'u32[144,128]{1,0:T(1,128)}', space=vmem, size = 0x12000, scoped, tag = 'internal scratch']
  %s0 = inlined_call_operand.vmem [shape: bf16[16,4], index: 0, kind: input, shape index: {}]
  %s1 = inlined_call_operand.vmem [shape: bf16[32,16], index: 1, kind: input, shape index: {}]
  %s2 = inlined_call_operand.vmem [shape: f32[32,1], index: 2, kind: input, shape index: {}]
  %s3 = inlined_call_operand.vmem [shape: bf16[64,32], index: 3, kind: input, shape index: {}]
  %s4 = inlined_call_operand.vmem [shape: f32[64,1], index: 4, kind: input, shape index: {}]
  %s5 = inlined_call_operand.vmem [shape: bf16[9,64], index: 5, kind: input, shape index: {}]
  %s6 = inlined_call_operand.vmem [shape: f32[9,1], index: 6, kind: input, shape index: {}]
  %s7 = inlined_call_operand.vmem [shape: f32[8,4], index: 7, kind: output, shape index: {}]
  %s8 = sld [smem:[#allocation0]]
  $region38: #{tpu_custom_call.1} parent=0
    _
  %s10 = ssub.s32 1, %s8
  %s11 = scalar_select 0, %s10, %s8
  // Predicated region
  $region2: #{tpu_custom_call.1} parent=0 // pred_check
    _
  $region3: #{tpu_custom_call.1} parent=0 // pred_check_branch
    %13 = sbr.rel (0) target = $region5
  $region4: #{tpu_custom_call.1} parent=0 // pred_region
    _
  $region5: #{tpu_custom_call.1} parent=0 // pred_fallthru
    _
  // Predicated region
  $region6: #{tpu_custom_call.1} parent=0 // pred_check
    _
  $region7: #{tpu_custom_call.1} parent=0 // pred_check_branch
    %15 = sbr.rel (0) target = $region9
  $region8: #{tpu_custom_call.1} parent=0 // pred_region
    _
  $region9: #{tpu_custom_call.1} parent=0 // pred_fallthru
    _
  // Predicated region
  $region10: #{tpu_custom_call.1} parent=0 // pred_check
    _
  $region11: #{tpu_custom_call.1} parent=0 // pred_check_branch
    %17 = sbr.rel (0) target = $region13
  $region12: #{tpu_custom_call.1} parent=0 // pred_region
    _
  $region13: #{tpu_custom_call.1} parent=0 // pred_fallthru
    _
  // Predicated region
  $region14: #{tpu_custom_call.1} parent=0 // pred_check
    _
  $region15: #{tpu_custom_call.1} parent=0 // pred_check_branch
    %19 = sbr.rel (0) target = $region17
  $region16: #{tpu_custom_call.1} parent=0 // pred_region
    _
  $region17: #{tpu_custom_call.1} parent=0 // pred_fallthru
    _
  // Predicated region
  $region18: #{tpu_custom_call.1} parent=0 // pred_check
    _
  $region19: #{tpu_custom_call.1} parent=0 // pred_check_branch
    %21 = sbr.rel (0) target = $region21
  $region20: #{tpu_custom_call.1} parent=0 // pred_region
    _
  $region21: #{tpu_custom_call.1} parent=0 // pred_fallthru
    _
  // Predicated region
  $region22: #{tpu_custom_call.1} parent=0 // pred_check
    _
  $region23: #{tpu_custom_call.1} parent=0 // pred_check_branch
    %23 = sbr.rel (0) target = $region25
  $region24: #{tpu_custom_call.1} parent=0 // pred_region
    _
  $region25: #{tpu_custom_call.1} parent=0 // pred_fallthru
    _
  // Predicated region
  $region26: #{tpu_custom_call.1} parent=0 // pred_check
    _
  $region27: #{tpu_custom_call.1} parent=0 // pred_check_branch
    %25 = sbr.rel (0) target = $region29
  $region28: #{tpu_custom_call.1} parent=0 // pred_region
    _
  $region29: #{tpu_custom_call.1} parent=0 // pred_fallthru
    _
  %v27 = vld [vmem:[%s0] sm:$0xf]
  %v28 = vld [vmem:[%s0 + $0x4] sm:$0xf]
  %v29 = vld [vmem:[%s1] sm:$0xf]
  %v30 = vld [vmem:[%s1 + $0x4] sm:$0xf]
  %v31 = vld [vmem:[%s1 + $0x8] sm:$0xf]
  %v32 = vld [vmem:[%s1 + $0xc] sm:$0xf]
  %v33 = vld [vmem:[%s2] sm:$0xff]
  %v34 = vld [vmem:[%s2 + $0x8] sm:$0xff]
  %v35 = vld [vmem:[%s2 + $0x10] sm:$0xff]
  %v36 = vld [vmem:[%s2 + $0x18] sm:$0xff]
  %38 = vset.pattern.permute.xlu0 0
  %39 = vperm.xlu0 %38, %v33
  %v40 = vpop.permute.xlu0 %39
  %43 = vset.pattern.permute.xlu0 0
  %44 = vperm.xlu0 %43, %v34
  %v45 = vpop.permute.xlu0 %44
  %48 = vset.pattern.permute.xlu0 0
  %49 = vperm.xlu0 %48, %v35
  %v50 = vpop.permute.xlu0 %49
  %53 = vset.pattern.permute.xlu0 0
  %54 = vperm.xlu0 %53, %v36
  %v55 = vpop.permute.xlu0 %54
  %v61 = vunpack.c.l.b16 %v29
  %v62 = vunpack.c.l.b16 %v30
  %v63 = vunpack.c.l.b16 %v31
  %v64 = vunpack.c.l.b16 %v32
  %v65 = vpack.c.b16 %v62, %v61
  %v66 = vpack.c.b16 %v64, %v63
  %v69 = vunpack.c.l.b16 %v27
  %v70 = vunpack.c.l.b16 %v28
  %v71 = vpack.c.b16 %v70, %v69
  %vm73 = vcmask 130048
  %v75 = vsel %vm73, %v65, 0
  %v78 = vsel %vm73, %v66, 0
  %80 = vmatprep.subr.bf16.mxu0 0
  %81 = vmatpush1.bf16.msra.mxu0 0
  %82 = vmatprep.subr.bf16.mxu0 0
  %83 = vmatpush1.bf16.msra.mxu0 0
  %84 = vmatprep.subr.bf16.mxu0 0
  %85 = vmatpush1.bf16.msra.mxu0 0
  %86 = vmatprep.subr.bf16.mxu0 0
  %87 = vmatpush1.bf16.msra.mxu0 0
  %88 = vmatprep.subr.bf16.mxu0 0
  %89 = vmatpush1.bf16.msra.mxu0 0
  %90 = vmatprep.subr.bf16.mxu0 0
  %91 = vmatpush1.bf16.msra.mxu0 0
  %92 = vmatprep.subr.bf16.mxu0 0
  %93 = vmatpush1.bf16.msra.mxu0 0
  %94 = vmatprep.subr.bf16.mxu0 0
  %95 = vmatpush1.bf16.msra.mxu0 %v71
  %96 = vmatprep.subr.bf16.mxu0 0
  %97 = vmatpush2.bf16.msra.mxu0 0
  %98 = vmatprep.subr.bf16.mxu0 0
  %99 = vmatpush2.bf16.msra.mxu0 0
  %100 = vmatprep.subr.bf16.mxu0 0
  %101 = vmatpush2.bf16.msra.mxu0 0
  %102 = vmatprep.subr.bf16.mxu0 0
  %103 = vmatpush2.bf16.msra.mxu0 0
  %104 = vmatprep.subr.bf16.mxu0 0
  %105 = vmatpush2.bf16.msra.mxu0 0
  %106 = vmatprep.subr.bf16.mxu0 0
  %107 = vmatpush2.bf16.msra.mxu0 0
  %108 = vmatprep.subr.bf16.mxu0 0
  %109 = vmatpush2.bf16.msra.mxu0 0
  %110 = vmatprep.subr.bf16.mxu0 0
  %111 = vmatpush2.bf16.msra.mxu0 0
  %112 = vmatprep.mubr.bf16.mxu0 0
  %113 = vmatmul.mubr.bf16.gmra.mxu0 %v75
  %v114 = vpop.f32.mrf.mxu0
  %v115 = vadd.f32 %v40, %v114
  %v116 = vpop.f32.mrf.mxu0
  %v117 = vpop.f32.mrf.mxu0
  %v118 = vadd.f32 %v45, %v117
  %v119 = vpop.f32.mrf.mxu0
  %120 = vmatprep.mubr.bf16.mxu0 0
  %121 = vmatmul.mubr.bf16.gmra.mxu0 %v78
  %v122 = vpop.f32.mrf.mxu0
  %v123 = vadd.f32 %v50, %v122
  %v124 = vpop.f32.mrf.mxu0
  %v125 = vpop.f32.mrf.mxu0
  %v126 = vadd.f32 %v55, %v125
  %v127 = vpop.f32.mrf.mxu0
  %128 = vdwg.mxu0
  %v129 = vmax.f32 %v115, 0.0
  %v130 = vmax.f32 %v118, 0.0
  %v131 = vmax.f32 %v123, 0.0
  %v132 = vmax.f32 %v126, 0.0
  %v133 = vld [vmem:[%s3] sm:$0xf]
  %v134 = vld [vmem:[%s3 + $0x4] sm:$0xf]
  %v135 = vld [vmem:[%s3 + $0x8] sm:$0xf]
  %v136 = vld [vmem:[%s3 + $0xc] sm:$0xf]
  %v137 = vld [vmem:[%s3 + $0x10] sm:$0xf]
  %v138 = vld [vmem:[%s3 + $0x14] sm:$0xf]
  %v139 = vld [vmem:[%s3 + $0x18] sm:$0xf]
  %v140 = vld [vmem:[%s3 + $0x1c] sm:$0xf]
  %v141 = vpack.c.bf16 %v130, %v129
  %v142 = vpack.c.bf16 %v132, %v131
  %v143 = vld [vmem:[%s4] sm:$0xff]
  %v144 = vld [vmem:[%s4 + $0x8] sm:$0xff]
  %v145 = vld [vmem:[%s4 + $0x10] sm:$0xff]
  %v146 = vld [vmem:[%s4 + $0x18] sm:$0xff]
  %v147 = vld [vmem:[%s4 + $0x20] sm:$0xff]
  %v148 = vld [vmem:[%s4 + $0x28] sm:$0xff]
  %v149 = vld [vmem:[%s4 + $0x30] sm:$0xff]
  %v150 = vld [vmem:[%s4 + $0x38] sm:$0xff]
  %152 = vset.pattern.permute.xlu0 0
  %153 = vperm.xlu0 %152, %v143
  %v154 = vpop.permute.xlu0 %153
  %157 = vset.pattern.permute.xlu0 0
  %158 = vperm.xlu0 %157, %v144
  %v159 = vpop.permute.xlu0 %158
  %162 = vset.pattern.permute.xlu0 0
  %163 = vperm.xlu0 %162, %v145
  %v164 = vpop.permute.xlu0 %163
  %167 = vset.pattern.permute.xlu0 0
  %168 = vperm.xlu0 %167, %v146
  %v169 = vpop.permute.xlu0 %168
  %172 = vset.pattern.permute.xlu0 0
  %173 = vperm.xlu0 %172, %v147
  %v174 = vpop.permute.xlu0 %173
  %177 = vset.pattern.permute.xlu0 0
  %178 = vperm.xlu0 %177, %v148
  %v179 = vpop.permute.xlu0 %178
  %182 = vset.pattern.permute.xlu0 0
  %183 = vperm.xlu0 %182, %v149
  %v184 = vpop.permute.xlu0 %183
  %187 = vset.pattern.permute.xlu0 0
  %188 = vperm.xlu0 %187, %v150
  %v189 = vpop.permute.xlu0 %188
  %v199 = vunpack.c.l.b16 %v133
  %v200 = vunpack.c.l.b16 %v134
  %v201 = vunpack.c.l.b16 %v135
  %v202 = vunpack.c.l.b16 %v136
  %v203 = vunpack.c.l.b16 %v137
  %v204 = vunpack.c.l.b16 %v138
  %v205 = vunpack.c.l.b16 %v139
  %v206 = vunpack.c.l.b16 %v140
  %v207 = vpack.c.b16 %v200, %v199
  %v208 = vpack.c.b16 %v202, %v201
  %v209 = vpack.c.b16 %v204, %v203
  %v210 = vpack.c.b16 %v206, %v205
  %vm211 = vcmask 261120
  %v213 = vsel %vm211, %v207, 0
  %v216 = vsel %vm211, %v208, 0
  %v219 = vsel %vm211, %v209, 0
  %v222 = vsel %vm211, %v210, 0
  %224 = vmatprep.subr.bf16.mxu0 0
  %225 = vmatpush1.bf16.msra.mxu0 0
  %226 = vmatprep.subr.bf16.mxu0 0
  %227 = vmatpush1.bf16.msra.mxu0 0
  %228 = vmatprep.subr.bf16.mxu0 0
  %229 = vmatpush1.bf16.msra.mxu0 0
  %230 = vmatprep.subr.bf16.mxu0 0
  %231 = vmatpush1.bf16.msra.mxu0 0
  %232 = vmatprep.subr.bf16.mxu0 0
  %233 = vmatpush1.bf16.msra.mxu0 0
  %234 = vmatprep.subr.bf16.mxu0 0
  %235 = vmatpush1.bf16.msra.mxu0 0
  %236 = vmatprep.subr.bf16.mxu0 0
  %237 = vmatpush1.bf16.msra.mxu0 %v142
  %238 = vmatprep.subr.bf16.mxu0 0
  %239 = vmatpush1.bf16.msra.mxu0 %v141
  %240 = vmatprep.subr.bf16.mxu0 0
  %241 = vmatpush2.bf16.msra.mxu0 0
  %242 = vmatprep.subr.bf16.mxu0 0
  %243 = vmatpush2.bf16.msra.mxu0 0
  %244 = vmatprep.subr.bf16.mxu0 0
  %245 = vmatpush2.bf16.msra.mxu0 0
  %246 = vmatprep.subr.bf16.mxu0 0
  %247 = vmatpush2.bf16.msra.mxu0 0
  %248 = vmatprep.subr.bf16.mxu0 0
  %249 = vmatpush2.bf16.msra.mxu0 0
  %250 = vmatprep.subr.bf16.mxu0 0
  %251 = vmatpush2.bf16.msra.mxu0 0
  %252 = vmatprep.subr.bf16.mxu0 0
  %253 = vmatpush2.bf16.msra.mxu0 0
  %254 = vmatprep.subr.bf16.mxu0 0
  %255 = vmatpush2.bf16.msra.mxu0 0
  %256 = vmatprep.mubr.bf16.mxu0 0
  %257 = vmatmul.mubr.bf16.gmra.mxu0 %v213
  %v258 = vpop.f32.mrf.mxu0
  %v259 = vadd.f32 %v154, %v258
  %v260 = vpop.f32.mrf.mxu0
  %v261 = vpop.f32.mrf.mxu0
  %v262 = vadd.f32 %v159, %v261
  %v263 = vpop.f32.mrf.mxu0
  %264 = vmatprep.mubr.bf16.mxu0 0
  %265 = vmatmul.mubr.bf16.gmra.mxu0 %v216
  %v266 = vpop.f32.mrf.mxu0
  %v267 = vadd.f32 %v164, %v266
  %v268 = vpop.f32.mrf.mxu0
  %v269 = vpop.f32.mrf.mxu0
  %v270 = vadd.f32 %v169, %v269
  %v271 = vpop.f32.mrf.mxu0
  %272 = vmatprep.mubr.bf16.mxu0 0
  %273 = vmatmul.mubr.bf16.gmra.mxu0 %v219
  %v274 = vpop.f32.mrf.mxu0
  %v275 = vadd.f32 %v174, %v274
  %v276 = vpop.f32.mrf.mxu0
  %v277 = vpop.f32.mrf.mxu0
  %v278 = vadd.f32 %v179, %v277
  %v279 = vpop.f32.mrf.mxu0
  %280 = vmatprep.mubr.bf16.mxu0 0
  %281 = vmatmul.mubr.bf16.gmra.mxu0 %v222
  %v282 = vpop.f32.mrf.mxu0
  %v283 = vadd.f32 %v184, %v282
  %v284 = vpop.f32.mrf.mxu0
  %v285 = vpop.f32.mrf.mxu0
  %v286 = vadd.f32 %v189, %v285
  %v287 = vpop.f32.mrf.mxu0
  %288 = vdwg.mxu0
  %v289 = vmax.f32 %v259, 0.0
  %v290 = vmax.f32 %v262, 0.0
  %v291 = vmax.f32 %v267, 0.0
  %v292 = vmax.f32 %v270, 0.0
  %v293 = vmax.f32 %v275, 0.0
  %v294 = vmax.f32 %v278, 0.0
  %v295 = vmax.f32 %v283, 0.0
  %v296 = vmax.f32 %v286, 0.0
  %v297 = vld [vmem:[%s5] sm:$0xf]
  %v298 = vld [vmem:[%s5 + $0x4] sm:$0x1]
  %v299 = vpack.c.bf16 %v290, %v289
  %v300 = vpack.c.bf16 %v292, %v291
  %v301 = vpack.c.bf16 %v294, %v293
  %v302 = vpack.c.bf16 %v296, %v295
  %v303 = vld [vmem:[%s6] sm:$0xff]
  %v304 = vld [vmem:[%s6 + $0x8] sm:$0x1]
  %306 = vset.pattern.permute.xlu0 0
  %307 = vperm.xlu0 %306, %v303
  %v308 = vpop.permute.xlu0 %307
  %311 = vset.pattern.permute.xlu0 0
  %312 = vperm.xlu0 %311, %v304
  %v313 = vpop.permute.xlu0 %312
  %v317 = vunpack.c.l.b16 %v297
  %v318 = vunpack.c.l.b16 %v298
  %v319 = vpack.c.b16 %v318, %v317
  %vm320 = vcmask 523264
  %v322 = vsel %vm320, %v319, 0
  %324 = vmatprep.subr.bf16.mxu0 0
  %325 = vmatpush1.bf16.msra.mxu0 0
  %326 = vmatprep.subr.bf16.mxu0 0
  %327 = vmatpush1.bf16.msra.mxu0 0
  %328 = vmatprep.subr.bf16.mxu0 0
  %329 = vmatpush1.bf16.msra.mxu0 0
  %330 = vmatprep.subr.bf16.mxu0 0
  %331 = vmatpush1.bf16.msra.mxu0 0
  %332 = vmatprep.subr.bf16.mxu0 0
  %333 = vmatpush1.bf16.msra.mxu0 %v302
  %334 = vmatprep.subr.bf16.mxu0 0
  %335 = vmatpush1.bf16.msra.mxu0 %v301
  %336 = vmatprep.subr.bf16.mxu0 0
  %337 = vmatpush1.bf16.msra.mxu0 %v300
  %338 = vmatprep.subr.bf16.mxu0 0
  %339 = vmatpush1.bf16.msra.mxu0 %v299
  %340 = vmatprep.subr.bf16.mxu0 0
  %341 = vmatpush2.bf16.msra.mxu0 0
  %342 = vmatprep.subr.bf16.mxu0 0
  %343 = vmatpush2.bf16.msra.mxu0 0
  %344 = vmatprep.subr.bf16.mxu0 0
  %345 = vmatpush2.bf16.msra.mxu0 0
  %346 = vmatprep.subr.bf16.mxu0 0
  %347 = vmatpush2.bf16.msra.mxu0 0
  %348 = vmatprep.subr.bf16.mxu0 0
  %349 = vmatpush2.bf16.msra.mxu0 0
  %350 = vmatprep.subr.bf16.mxu0 0
  %351 = vmatpush2.bf16.msra.mxu0 0
  %352 = vmatprep.subr.bf16.mxu0 0
  %353 = vmatpush2.bf16.msra.mxu0 0
  %354 = vmatprep.subr.bf16.mxu0 0
  %355 = vmatpush2.bf16.msra.mxu0 0
  %356 = vmatprep.mubr.bf16.mxu0 0
  %357 = vmatmul.mubr.bf16.gmra.mxu0 %v322
  %v358 = vpop.f32.mrf.mxu0
  %v359 = vadd.f32 %v308, %v358
  %v360 = vpop.f32.mrf.mxu0
  %v361 = vpop.f32.mrf.mxu0
  %v362 = vadd.f32 %v313, %v361
  %v363 = vpop.f32.mrf.mxu0
  %364 = vdwg.mxu0
  %vm365 = vcmask 31744
  %v366 = vsel %vm365, %v359, 0.0
  %367 = vadd.xlane.f32.xlu0 %v366
  %v368 = vpop.xlane.xlu0 %367
  %v369 = vrot.slane %v368, 4
  %v370 = vadd.f32 %v368, %v369
  %v371 = vrot.slane %v370, 2
  %v372 = vadd.f32 %v370, %v371
  %v373 = vrot.slane %v372, 1
  %v374 = vadd.f32 %v372, %v373
  %s375 = vtos %v374
  %v376 = vrcp.pop 32.0
  %s377 = vtos %v376
  %s378 = smul.f32 %s375, %s377
  %v379 = vlaneseq
  %v380 = vshrl.u32 %v379, 7
  %v381 = vsub.s32 0, %v380
  %v382 = vrot.slane %v362, %v381
  %v383 = vadd.f32 %v382, %v359
  %v384 = vstv %s378
  %v385 = vsub.f32 %v383, %v384
  %386 = vst.msk [vmem:[%s7] sm:$0xff] %vm365, %v385
  // Predicated region
  $region30: #{tpu_custom_call.1} parent=0 // pred_check
    _
  $region31: #{tpu_custom_call.1} parent=0 // pred_check_branch
    %388 = sbr.rel (0) target = $region33
  $region32: #{tpu_custom_call.1} parent=0 // pred_region
    _
  $region33: #{tpu_custom_call.1} parent=0 // pred_fallthru
    _
  // Predicated region
  $region34: #{tpu_custom_call.1} parent=0 // pred_check
    _
  $region35: #{tpu_custom_call.1} parent=0 // pred_check_branch
    %390 = sbr.rel (0) target = $region37
  $region36: #{tpu_custom_call.1} parent=0 // pred_region
    _
  $region37: #{tpu_custom_call.1} parent=0 // pred_fallthru
    _

</llo_original>
